<compile_context>
chip_gen: v6e
topology: v6e:2x2x1
jax: 0.10.0
libtpu: 0.0.40
codegen_flags: <defaults>
</compile_context>

<pallas_src>
import jax
import jax.numpy as jnp
import numpy as np
from jax.experimental import pallas as pl
from jax.experimental.pallas import tpu as pltpu


# ----------------------------------------------------------------------------
# Fused Pallas kernel: whole JKNetConcat forward in one call
# ----------------------------------------------------------------------------
def _jknet_fused_kernel(a_ref, x_ref, w0_ref, b0_ref, wr_ref, br_ref,
                        wlast_ref, blast_ref, o_ref):
    """out = Linear( concat_i relu( [A@h_i, h_i] @ W_i + b_i ) )."""
    a = a_ref[...]                                  # (N, N)   adjacency, VMEM-resident
    x = x_ref[...]                                  # (N, F_in)
    n_layers = wr_ref.shape[0] + 1

    # ---- layer 0 (input width F_in) ----
    agg = jnp.dot(a, x, preferred_element_type=jnp.float32)            # A @ x
    hc = jnp.concatenate([agg, x], axis=-1)                            # (N, 2*F_in)
    h = jnp.dot(hc, w0_ref[...], preferred_element_type=jnp.float32) + b0_ref[...]
    h = jnp.maximum(h, 0.0)                                            # ReLU (dropout = id)
    layer_outputs = [h]

    # ---- layers 1 .. n_layers-1 (width n_units), statically unrolled ----
    for i in range(1, n_layers):
        agg = jnp.dot(a, h, preferred_element_type=jnp.float32)        # A @ h
        hc = jnp.concatenate([agg, h], axis=-1)                        # (N, 2*n_units)
        h = (jnp.dot(hc, wr_ref[i - 1], preferred_element_type=jnp.float32)
             + br_ref[i - 1])
        h = jnp.maximum(h, 0.0)
        layer_outputs.append(h)

    # ---- jumping-knowledge concat + final linear, all in VMEM ----
    cat = jnp.concatenate(layer_outputs, axis=-1)                      # (N, n_layers*n_units)
    o_ref[...] = (jnp.dot(cat, wlast_ref[...], preferred_element_type=jnp.float32)
                  + blast_ref[...])


# ----------------------------------------------------------------------------
# Wrapper (single grid point — everything fits comfortably in VMEM at these sizes)
# ----------------------------------------------------------------------------
def _full_spec(shape):
    return pl.BlockSpec(shape, lambda: tuple(0 for _ in shape))


def jknet_concat_forward(fused, adj, x):
    n = x.shape[0]
    out_features = fused["w_last"].shape[1]
    return pl.pallas_call(
        _jknet_fused_kernel,
        out_shape=jax.ShapeDtypeStruct((n, out_features), jnp.float32),
        in_specs=[_full_spec(adj.shape), _full_spec(x.shape),
                  _full_spec(fused["w0"].shape), _full_spec(fused["b0"].shape),
                  _full_spec(fused["w_rest"].shape), _full_spec(fused["b_rest"].shape),
                  _full_spec(fused["w_last"].shape), _full_spec(fused["b_last"].shape)],
        out_specs=_full_spec((n, out_features)),
        compiler_params=pltpu.CompilerParams(vmem_limit_bytes=64 << 20),
    )(adj, x, fused["w0"], fused["b0"], fused["w_rest"], fused["b_rest"],
      fused["w_last"], fused["b_last"])


# ----------------------------------------------------------------------------
# Parameters (PyTorch-style per-layer) + host-side fusion into kernel operands
# ----------------------------------------------------------------------------
def init_params(key, in_features, out_features, n_layers=6, n_units=16):
    params = {"gconv": [], "n_layers": n_layers}
    fin = in_features
    for _ in range(n_layers):
        key, k1, k2 = jax.random.split(key, 3)
        scale_l = 1.0 / jnp.sqrt(fin)
        layer = {
            # weights stored pre-transposed: (F_in, F_out)
            "wl": jax.random.uniform(k1, (fin, n_units), jnp.float32,
                                     -scale_l, scale_l),
            "bl": jnp.zeros((n_units,), jnp.float32),
            "ws": jax.random.uniform(k2, (fin, n_units), jnp.float32,
                                     -scale_l, scale_l),
            "bs": jnp.zeros((n_units,), jnp.float32),
            "bias": jnp.zeros((n_units,), jnp.float32),   # nn.Parameter(zeros)
        }
        params["gconv"].append(layer)
        fin = n_units
    key, k3 = jax.random.split(key)
    scale = 1.0 / jnp.sqrt(n_layers * n_units)
    params["last_w"] = jax.random.uniform(
        k3, (n_layers * n_units, out_features), jnp.float32, -scale, scale)
    params["last_b"] = jnp.zeros((out_features,), jnp.float32)
    return params


def fuse_params(params):
    """Merge (Wl, Ws) -> one weight, (bl, bs, bias) -> one bias, stack layers 1..L-1."""
    g0 = params["gconv"][0]
    w0 = jnp.concatenate([g0["wl"], g0["ws"]], axis=0)                 # (2*F_in, U)
    b0 = (g0["bl"] + g0["bs"] + g0["bias"]).reshape(1, -1)             # (1, U)
    rest = params["gconv"][1:]
    w_rest = jnp.stack([jnp.concatenate([l["wl"], l["ws"]], axis=0)
                        for l in rest], axis=0)                        # (L-1, 2U, U)
    b_rest = jnp.stack([(l["bl"] + l["bs"] + l["bias"]).reshape(1, -1)
                        for l in rest], axis=0)                        # (L-1, 1, U)
    return {"w0": w0, "b0": b0, "w_rest": w_rest, "b_rest": b_rest,
            "w_last": params["last_w"],
            "b_last": params["last_b"].reshape(1, -1)}


# ----------------------------------------------------------------------------
# Pure-JAX reference (matches the original un-fused math) for a sanity check
# ----------------------------------------------------------------------------
def _reference_forward(params, adj, x):
    layer_outputs = []
    h = x
    for layer in params["gconv"]:
        agg = adj @ h
        h = agg @ layer["wl"] + layer["bl"] + h @ layer["ws"] + layer["bs"] + layer["bias"]
        h = jnp.maximum(h, 0.0)
        layer_outputs.append(h)
    cat = jnp.concatenate(layer_outputs, axis=1)
    return cat @ params["last_w"] + params["last_b"]


# ----------------------------------------------------------------------------
if __name__ == "__main__":
    key = jax.random.PRNGKey(0)

    N = 8             # number of graph nodes
    IN_FEATURES = 4
    OUT_FEATURES = 7
    N_LAYERS = 6
    N_UNITS = 16

    # Deterministic dense adjacency (sum aggregation => agg = A @ x).
    key, ka, kx = jax.random.split(key, 3)
    adj = (jax.random.uniform(ka, (N, N)) > 0.5).astype(jnp.float32)
    # ensure every node has at least one in-neighbour (a ring edge)
    adj = jnp.maximum(adj, jnp.eye(N, dtype=jnp.float32)[:, ::-1])

    x = jax.random.normal(kx, (N, IN_FEATURES), jnp.float32)

    params = init_params(key, IN_FEATURES, OUT_FEATURES,
                         n_layers=N_LAYERS, n_units=N_UNITS)
    fused = fuse_params(params)

    out = jknet_concat_forward(fused, adj, x)
    out = jax.block_until_ready(out)
    assert out.shape == (N, OUT_FEATURES), out.shape

    ref = _reference_forward(params, adj, x)
    np.testing.assert_allclose(np.asarray(out), np.asarray(ref),
                               rtol=1e-3, atol=1e-3)

    print("KERNEL_OK")
</pallas_src>

<mosaic_0001>
module attributes {stable_mosaic.version = 11 : i64} {
  func.func @_jknet_fused_kernel(%arg0: memref<8x8xf32, #tpu.memory_space<vmem>>, %arg1: memref<8x4xf32, #tpu.memory_space<vmem>>, %arg2: memref<8x16xf32, #tpu.memory_space<vmem>>, %arg3: memref<1x16xf32, #tpu.memory_space<vmem>>, %arg4: memref<5x32x16xf32, #tpu.memory_space<vmem>>, %arg5: memref<5x1x16xf32, #tpu.memory_space<vmem>>, %arg6: memref<96x7xf32, #tpu.memory_space<vmem>>, %arg7: memref<1x7xf32, #tpu.memory_space<vmem>>, %arg8: memref<8x7xf32, #tpu.memory_space<vmem>>) attributes {dimension_semantics = [], scalar_prefetch = 0 : i64, scratch_operands = 0 : i64, tpu.core_type = #tpu.core_type<tc>} {
    %c0 = arith.constant 0 : index
    %c0_0 = arith.constant 0 : index
    %0 = vector.load %arg0[%c0, %c0_0] : memref<8x8xf32, #tpu.memory_space<vmem>>, vector<8x8xf32>
    %c0_1 = arith.constant 0 : index
    %c0_2 = arith.constant 0 : index
    %1 = vector.load %arg1[%c0_1, %c0_2] : memref<8x4xf32, #tpu.memory_space<vmem>>, vector<8x4xf32>
    %cst = arith.constant dense<0.000000e+00> : vector<8x4xf32>
    %2 = tpu.matmul %0, %1, %cst {dimension_numbers = #tpu.dot_dimension_numbers<[1], [0], [0], [1], [0, 0, 1, 1], [], []>} : vector<8x8xf32>, vector<8x4xf32>, vector<8x4xf32> -> vector<8x4xf32>
    %3 = tpu.concatenate %2, %1 in 1 : vector<8x4xf32>, vector<8x4xf32> -> vector<8x8xf32>
    %c0_3 = arith.constant 0 : index
    %c0_4 = arith.constant 0 : index
    %4 = vector.load %arg2[%c0_3, %c0_4] : memref<8x16xf32, #tpu.memory_space<vmem>>, vector<8x16xf32>
    %cst_5 = arith.constant dense<0.000000e+00> : vector<8x16xf32>
    %5 = tpu.matmul %3, %4, %cst_5 {dimension_numbers = #tpu.dot_dimension_numbers<[1], [0], [0], [1], [0, 0, 1, 1], [], []>} : vector<8x8xf32>, vector<8x16xf32>, vector<8x16xf32> -> vector<8x16xf32>
    %c0_6 = arith.constant 0 : index
    %c0_7 = arith.constant 0 : index
    %6 = vector.load %arg3[%c0_6, %c0_7] : memref<1x16xf32, #tpu.memory_space<vmem>>, vector<1x16xf32>
    %7 = vector.broadcast %6 : vector<1x16xf32> to vector<8x16xf32>
    %8 = arith.addf %5, %7 : vector<8x16xf32>
    %cst_8 = arith.constant 0.000000e+00 : f32
    %9 = vector.broadcast %cst_8 : f32 to vector<8x16xf32>
    %10 = arith.maximumf %8, %9 : vector<8x16xf32>
    %cst_9 = arith.constant dense<0.000000e+00> : vector<8x16xf32>
    %11 = tpu.matmul %0, %10, %cst_9 {dimension_numbers = #tpu.dot_dimension_numbers<[1], [0], [0], [1], [0, 0, 1, 1], [], []>} : vector<8x8xf32>, vector<8x16xf32>, vector<8x16xf32> -> vector<8x16xf32>
    %12 = tpu.concatenate %11, %10 in 1 : vector<8x16xf32>, vector<8x16xf32> -> vector<8x32xf32>
    %c0_10 = arith.constant 0 : index
    %c0_11 = arith.constant 0 : index
    %c0_12 = arith.constant 0 : index
    %13 = vector.load %arg4[%c0_10, %c0_11, %c0_12] : memref<5x32x16xf32, #tpu.memory_space<vmem>>, vector<1x32x16xf32>
    %14 = vector.shape_cast %13 : vector<1x32x16xf32> to vector<32x16xf32>
    %cst_13 = arith.constant dense<0.000000e+00> : vector<8x16xf32>
    %15 = tpu.matmul %12, %14, %cst_13 {dimension_numbers = #tpu.dot_dimension_numbers<[1], [0], [0], [1], [0, 0, 1, 1], [], []>} : vector<8x32xf32>, vector<32x16xf32>, vector<8x16xf32> -> vector<8x16xf32>
    %c0_14 = arith.constant 0 : index
    %c0_15 = arith.constant 0 : index
    %c0_16 = arith.constant 0 : index
    %16 = vector.load %arg5[%c0_14, %c0_15, %c0_16] : memref<5x1x16xf32, #tpu.memory_space<vmem>>, vector<1x1x16xf32>
    %17 = vector.shape_cast %16 : vector<1x1x16xf32> to vector<1x16xf32>
    %18 = vector.broadcast %17 : vector<1x16xf32> to vector<8x16xf32>
    %19 = arith.addf %15, %18 : vector<8x16xf32>
    %cst_17 = arith.constant 0.000000e+00 : f32
    %20 = vector.broadcast %cst_17 : f32 to vector<8x16xf32>
    %21 = arith.maximumf %19, %20 : vector<8x16xf32>
    %cst_18 = arith.constant dense<0.000000e+00> : vector<8x16xf32>
    %22 = tpu.matmul %0, %21, %cst_18 {dimension_numbers = #tpu.dot_dimension_numbers<[1], [0], [0], [1], [0, 0, 1, 1], [], []>} : vector<8x8xf32>, vector<8x16xf32>, vector<8x16xf32> -> vector<8x16xf32>
    %23 = tpu.concatenate %22, %21 in 1 : vector<8x16xf32>, vector<8x16xf32> -> vector<8x32xf32>
    %c1 = arith.constant 1 : index
    %c0_19 = arith.constant 0 : index
    %c0_20 = arith.constant 0 : index
    %24 = vector.load %arg4[%c1, %c0_19, %c0_20] : memref<5x32x16xf32, #tpu.memory_space<vmem>>, vector<1x32x16xf32>
    %25 = vector.shape_cast %24 : vector<1x32x16xf32> to vector<32x16xf32>
    %cst_21 = arith.constant dense<0.000000e+00> : vector<8x16xf32>
    %26 = tpu.matmul %23, %25, %cst_21 {dimension_numbers = #tpu.dot_dimension_numbers<[1], [0], [0], [1], [0, 0, 1, 1], [], []>} : vector<8x32xf32>, vector<32x16xf32>, vector<8x16xf32> -> vector<8x16xf32>
    %c1_22 = arith.constant 1 : index
    %c0_23 = arith.constant 0 : index
    %c0_24 = arith.constant 0 : index
    %27 = vector.load %arg5[%c1_22, %c0_23, %c0_24] : memref<5x1x16xf32, #tpu.memory_space<vmem>>, vector<1x1x16xf32>
    %28 = vector.shape_cast %27 : vector<1x1x16xf32> to vector<1x16xf32>
    %29 = vector.broadcast %28 : vector<1x16xf32> to vector<8x16xf32>
    %30 = arith.addf %26, %29 : vector<8x16xf32>
    %cst_25 = arith.constant 0.000000e+00 : f32
    %31 = vector.broadcast %cst_25 : f32 to vector<8x16xf32>
    %32 = arith.maximumf %30, %31 : vector<8x16xf32>
    %cst_26 = arith.constant dense<0.000000e+00> : vector<8x16xf32>
    %33 = tpu.matmul %0, %32, %cst_26 {dimension_numbers = #tpu.dot_dimension_numbers<[1], [0], [0], [1], [0, 0, 1, 1], [], []>} : vector<8x8xf32>, vector<8x16xf32>, vector<8x16xf32> -> vector<8x16xf32>
    %34 = tpu.concatenate %33, %32 in 1 : vector<8x16xf32>, vector<8x16xf32> -> vector<8x32xf32>
    %c2 = arith.constant 2 : index
    %c0_27 = arith.constant 0 : index
    %c0_28 = arith.constant 0 : index
    %35 = vector.load %arg4[%c2, %c0_27, %c0_28] : memref<5x32x16xf32, #tpu.memory_space<vmem>>, vector<1x32x16xf32>
    %36 = vector.shape_cast %35 : vector<1x32x16xf32> to vector<32x16xf32>
    %cst_29 = arith.constant dense<0.000000e+00> : vector<8x16xf32>
    %37 = tpu.matmul %34, %36, %cst_29 {dimension_numbers = #tpu.dot_dimension_numbers<[1], [0], [0], [1], [0, 0, 1, 1], [], []>} : vector<8x32xf32>, vector<32x16xf32>, vector<8x16xf32> -> vector<8x16xf32>
    %c2_30 = arith.constant 2 : index
    %c0_31 = arith.constant 0 : index
    %c0_32 = arith.constant 0 : index
    %38 = vector.load %arg5[%c2_30, %c0_31, %c0_32] : memref<5x1x16xf32, #tpu.memory_space<vmem>>, vector<1x1x16xf32>
    %39 = vector.shape_cast %38 : vector<1x1x16xf32> to vector<1x16xf32>
    %40 = vector.broadcast %39 : vector<1x16xf32> to vector<8x16xf32>
    %41 = arith.addf %37, %40 : vector<8x16xf32>
    %cst_33 = arith.constant 0.000000e+00 : f32
    %42 = vector.broadcast %cst_33 : f32 to vector<8x16xf32>
    %43 = arith.maximumf %41, %42 : vector<8x16xf32>
    %cst_34 = arith.constant dense<0.000000e+00> : vector<8x16xf32>
    %44 = tpu.matmul %0, %43, %cst_34 {dimension_numbers = #tpu.dot_dimension_numbers<[1], [0], [0], [1], [0, 0, 1, 1], [], []>} : vector<8x8xf32>, vector<8x16xf32>, vector<8x16xf32> -> vector<8x16xf32>
    %45 = tpu.concatenate %44, %43 in 1 : vector<8x16xf32>, vector<8x16xf32> -> vector<8x32xf32>
    %c3 = arith.constant 3 : index
    %c0_35 = arith.constant 0 : index
    %c0_36 = arith.constant 0 : index
    %46 = vector.load %arg4[%c3, %c0_35, %c0_36] : memref<5x32x16xf32, #tpu.memory_space<vmem>>, vector<1x32x16xf32>
    %47 = vector.shape_cast %46 : vector<1x32x16xf32> to vector<32x16xf32>
    %cst_37 = arith.constant dense<0.000000e+00> : vector<8x16xf32>
    %48 = tpu.matmul %45, %47, %cst_37 {dimension_numbers = #tpu.dot_dimension_numbers<[1], [0], [0], [1], [0, 0, 1, 1], [], []>} : vector<8x32xf32>, vector<32x16xf32>, vector<8x16xf32> -> vector<8x16xf32>
    %c3_38 = arith.constant 3 : index
    %c0_39 = arith.constant 0 : index
    %c0_40 = arith.constant 0 : index
    %49 = vector.load %arg5[%c3_38, %c0_39, %c0_40] : memref<5x1x16xf32, #tpu.memory_space<vmem>>, vector<1x1x16xf32>
    %50 = vector.shape_cast %49 : vector<1x1x16xf32> to vector<1x16xf32>
    %51 = vector.broadcast %50 : vector<1x16xf32> to vector<8x16xf32>
    %52 = arith.addf %48, %51 : vector<8x16xf32>
    %cst_41 = arith.constant 0.000000e+00 : f32
    %53 = vector.broadcast %cst_41 : f32 to vector<8x16xf32>
    %54 = arith.maximumf %52, %53 : vector<8x16xf32>
    %cst_42 = arith.constant dense<0.000000e+00> : vector<8x16xf32>
    %55 = tpu.matmul %0, %54, %cst_42 {dimension_numbers = #tpu.dot_dimension_numbers<[1], [0], [0], [1], [0, 0, 1, 1], [], []>} : vector<8x8xf32>, vector<8x16xf32>, vector<8x16xf32> -> vector<8x16xf32>
    %56 = tpu.concatenate %55, %54 in 1 : vector<8x16xf32>, vector<8x16xf32> -> vector<8x32xf32>
    %c4 = arith.constant 4 : index
    %c0_43 = arith.constant 0 : index
    %c0_44 = arith.constant 0 : index
    %57 = vector.load %arg4[%c4, %c0_43, %c0_44] : memref<5x32x16xf32, #tpu.memory_space<vmem>>, vector<1x32x16xf32>
    %58 = vector.shape_cast %57 : vector<1x32x16xf32> to vector<32x16xf32>
    %cst_45 = arith.constant dense<0.000000e+00> : vector<8x16xf32>
    %59 = tpu.matmul %56, %58, %cst_45 {dimension_numbers = #tpu.dot_dimension_numbers<[1], [0], [0], [1], [0, 0, 1, 1], [], []>} : vector<8x32xf32>, vector<32x16xf32>, vector<8x16xf32> -> vector<8x16xf32>
    %c4_46 = arith.constant 4 : index
    %c0_47 = arith.constant 0 : index
    %c0_48 = arith.constant 0 : index
    %60 = vector.load %arg5[%c4_46, %c0_47, %c0_48] : memref<5x1x16xf32, #tpu.memory_space<vmem>>, vector<1x1x16xf32>
    %61 = vector.shape_cast %60 : vector<1x1x16xf32> to vector<1x16xf32>
    %62 = vector.broadcast %61 : vector<1x16xf32> to vector<8x16xf32>
    %63 = arith.addf %59, %62 : vector<8x16xf32>
    %cst_49 = arith.constant 0.000000e+00 : f32
    %64 = vector.broadcast %cst_49 : f32 to vector<8x16xf32>
    %65 = arith.maximumf %63, %64 : vector<8x16xf32>
    %66 = tpu.concatenate %10, %21, %32, %43, %54, %65 in 1 : vector<8x16xf32>, vector<8x16xf32>, vector<8x16xf32>, vector<8x16xf32>, vector<8x16xf32>, vector<8x16xf32> -> vector<8x96xf32>
    %c0_50 = arith.constant 0 : index
    %c0_51 = arith.constant 0 : index
    %67 = vector.load %arg6[%c0_50, %c0_51] : memref<96x7xf32, #tpu.memory_space<vmem>>, vector<96x7xf32>
    %cst_52 = arith.constant dense<0.000000e+00> : vector<8x7xf32>
    %68 = tpu.matmul %66, %67, %cst_52 {dimension_numbers = #tpu.dot_dimension_numbers<[1], [0], [0], [1], [0, 0, 1, 1], [], []>} : vector<8x96xf32>, vector<96x7xf32>, vector<8x7xf32> -> vector<8x7xf32>
    %c0_53 = arith.constant 0 : index
    %c0_54 = arith.constant 0 : index
    %69 = vector.load %arg7[%c0_53, %c0_54] : memref<1x7xf32, #tpu.memory_space<vmem>>, vector<1x7xf32>
    %70 = vector.broadcast %69 : vector<1x7xf32> to vector<8x7xf32>
    %71 = arith.addf %68, %70 : vector<8x7xf32>
    %c0_55 = arith.constant 0 : index
    %c0_56 = arith.constant 0 : index
    %72 = vector.load %arg8[%c0_55, %c0_56] : memref<8x7xf32, #tpu.memory_space<vmem>>, vector<8x7xf32>
    tpu.vector_store %arg8[%c0_55, %c0_56], %71 {strides = array<i32>} : memref<8x7xf32, #tpu.memory_space<vmem>>, vector<8x7xf32>,
    return
  }
}

</mosaic_0001>

<llo_original>
// kernel: tpu_custom_call.1
$region0: #{tpu_custom_call.1}
  #allocation0 [shape = 'u32[]', space=smem, size = 0x4, offset = 0x4, fixed_abs, tag = 'smem constant byte address 0x4 - core index']
  #allocation1 [shape = 'u32[144,128]{1,0:T(1,128)}', space=vmem, size = 0x12000, scoped, tag = 'internal scratch']
  %s0 = inlined_call_operand.vmem [shape: f32[8,8], index: 0, kind: input, shape index: {}]
  %s1 = inlined_call_operand.vmem [shape: f32[8,4], index: 1, kind: input, shape index: {}]
  %s2 = inlined_call_operand.vmem [shape: f32[8,16], index: 2, kind: input, shape index: {}]
  %s3 = inlined_call_operand.vmem [shape: f32[1,16], index: 3, kind: input, shape index: {}]
  %s4 = inlined_call_operand.vmem [shape: f32[5,32,16], index: 4, kind: input, shape index: {}]
  %s5 = inlined_call_operand.vmem [shape: f32[5,1,16], index: 5, kind: input, shape index: {}]
  %s6 = inlined_call_operand.vmem [shape: f32[96,7], index: 6, kind: input, shape index: {}]
  %s7 = inlined_call_operand.vmem [shape: f32[1,7], index: 7, kind: input, shape index: {}]
  %s8 = inlined_call_operand.hbm [shape: f32[8,7], index: 8, kind: output, shape index: {}]
  %s9 = sld [smem:[#allocation0]]
  $region42: #{tpu_custom_call.1} parent=0
    _
  %s11 = ssub.s32 1, %s9
  %s12 = scalar_select 0, %s11, %s9
  $region1: #{tpu_custom_call.1} parent=0
    #allocation2 [shape = 'u8[4096]{0}', space=vmem, size = 0x1000, scoped, tag = 'output window, operand 0, single buffered']
    #allocation3 [shape = 's32[1]{0}', space=sflag, size = 0x4, scoped, tag = 'scoped memory for tpu_custom_call.1']
    %13 = vsyncpa [#allocation3], 0
    // Predicated region
    $region2: #{tpu_custom_call.1} parent=1 // pred_check
      _
    $region3: #{tpu_custom_call.1} parent=1 // pred_check_branch
      %15 = sbr.rel (0) target = $region5
    $region4: #{tpu_custom_call.1} parent=1 // pred_region
      _
    $region5: #{tpu_custom_call.1} parent=1 // pred_fallthru
      _
    // Predicated region
    $region6: #{tpu_custom_call.1} parent=1 // pred_check
      _
    $region7: #{tpu_custom_call.1} parent=1 // pred_check_branch
      %17 = sbr.rel (0) target = $region9
    $region8: #{tpu_custom_call.1} parent=1 // pred_region
      _
    $region9: #{tpu_custom_call.1} parent=1 // pred_fallthru
      _
    // Predicated region
    $region10: #{tpu_custom_call.1} parent=1 // pred_check
      _
    $region11: #{tpu_custom_call.1} parent=1 // pred_check_branch
      %19 = sbr.rel (0) target = $region13
    $region12: #{tpu_custom_call.1} parent=1 // pred_region
      _
    $region13: #{tpu_custom_call.1} parent=1 // pred_fallthru
      _
    // Predicated region
    $region14: #{tpu_custom_call.1} parent=1 // pred_check
      _
    $region15: #{tpu_custom_call.1} parent=1 // pred_check_branch
      %21 = sbr.rel (0) target = $region17
    $region16: #{tpu_custom_call.1} parent=1 // pred_region
      _
    $region17: #{tpu_custom_call.1} parent=1 // pred_fallthru
      _
    // Predicated region
    $region18: #{tpu_custom_call.1} parent=1 // pred_check
      _
    $region19: #{tpu_custom_call.1} parent=1 // pred_check_branch
      %23 = sbr.rel (0) target = $region21
    $region20: #{tpu_custom_call.1} parent=1 // pred_region
      _
    $region21: #{tpu_custom_call.1} parent=1 // pred_fallthru
      _
    // Predicated region
    $region22: #{tpu_custom_call.1} parent=1 // pred_check
      _
    $region23: #{tpu_custom_call.1} parent=1 // pred_check_branch
      %25 = sbr.rel (0) target = $region25
    $region24: #{tpu_custom_call.1} parent=1 // pred_region
      _
    $region25: #{tpu_custom_call.1} parent=1 // pred_fallthru
      _
    // Predicated region
    $region26: #{tpu_custom_call.1} parent=1 // pred_check
      _
    $region27: #{tpu_custom_call.1} parent=1 // pred_check_branch
      %27 = sbr.rel (0) target = $region29
    $region28: #{tpu_custom_call.1} parent=1 // pred_region
      _
    $region29: #{tpu_custom_call.1} parent=1 // pred_fallthru
      _
    // Predicated region
    $region30: #{tpu_custom_call.1} parent=1 // pred_check
      _
    $region31: #{tpu_custom_call.1} parent=1 // pred_check_branch
      %29 = sbr.rel (0) target = $region33
    $region32: #{tpu_custom_call.1} parent=1 // pred_region
      _
    $region33: #{tpu_custom_call.1} parent=1 // pred_fallthru
      _
    %v30 = vld [vmem:[%s0] sm:$0xff]
    %v31 = vld [vmem:[%s1] sm:$0xff]
    %vm32 = vcmask 64512
    %v34 = vsel %vm32, %v30, 0
    %36 = vmatprep.subr.mxu0 0.0
    %37 = vmatpush1.msra.mxu0 0.0
    %38 = vmatprep.subr.mxu0 0.0
    %39 = vmatpush1.msra.mxu0 0.0
    %40 = vmatprep.subr.mxu0 0.0
    %41 = vmatpush1.msra.mxu0 0.0
    %42 = vmatprep.subr.mxu0 0.0
    %43 = vmatpush1.msra.mxu0 0.0
    %44 = vmatprep.subr.mxu0 0.0
    %45 = vmatpush1.msra.mxu0 0.0
    %46 = vmatprep.subr.mxu0 0.0
    %47 = vmatpush1.msra.mxu0 0.0
    %48 = vmatprep.subr.mxu0 0.0
    %49 = vmatpush1.msra.mxu0 0.0
    %50 = vmatprep.subr.mxu0 0.0
    %51 = vmatpush1.msra.mxu0 0.0
    %52 = vmatprep.subr.mxu0 0.0
    %53 = vmatpush1.msra.mxu0 0.0
    %54 = vmatprep.subr.mxu0 0.0
    %55 = vmatpush1.msra.mxu0 0.0
    %56 = vmatprep.subr.mxu0 0.0
    %57 = vmatpush1.msra.mxu0 0.0
    %58 = vmatprep.subr.mxu0 0.0
    %59 = vmatpush1.msra.mxu0 0.0
    %60 = vmatprep.subr.mxu0 0.0
    %61 = vmatpush1.msra.mxu0 0.0
    %62 = vmatprep.subr.mxu0 0.0
    %63 = vmatpush1.msra.mxu0 0.0
    %64 = vmatprep.subr.mxu0 0.0
    %65 = vmatpush1.msra.mxu0 0.0
    %66 = vmatprep.subr.mxu0 0.0
    %67 = vmatpush1.msra.mxu0 %v31
    %68 = vmatprep.subr.mxu0 0.0
    %69 = vmatpush2.msra.mxu0 0.0
    %70 = vmatprep.subr.mxu0 0.0
    %71 = vmatpush2.msra.mxu0 0.0
    %72 = vmatprep.subr.mxu0 0.0
    %73 = vmatpush2.msra.mxu0 0.0
    %74 = vmatprep.subr.mxu0 0.0
    %75 = vmatpush2.msra.mxu0 0.0
    %76 = vmatprep.subr.mxu0 0.0
    %77 = vmatpush2.msra.mxu0 0.0
    %78 = vmatprep.subr.mxu0 0.0
    %79 = vmatpush2.msra.mxu0 0.0
    %80 = vmatprep.subr.mxu0 0.0
    %81 = vmatpush2.msra.mxu0 0.0
    %82 = vmatprep.subr.mxu0 0.0
    %83 = vmatpush2.msra.mxu0 0.0
    %84 = vmatprep.subr.mxu0 0.0
    %85 = vmatpush2.msra.mxu0 0.0
    %86 = vmatprep.subr.mxu0 0.0
    %87 = vmatpush2.msra.mxu0 0.0
    %88 = vmatprep.subr.mxu0 0.0
    %89 = vmatpush2.msra.mxu0 0.0
    %90 = vmatprep.subr.mxu0 0.0
    %91 = vmatpush2.msra.mxu0 0.0
    %92 = vmatprep.subr.mxu0 0.0
    %93 = vmatpush2.msra.mxu0 0.0
    %94 = vmatprep.subr.mxu0 0.0
    %95 = vmatpush2.msra.mxu0 0.0
    %96 = vmatprep.subr.mxu0 0.0
    %97 = vmatpush2.msra.mxu0 0.0
    %98 = vmatprep.subr.mxu0 0.0
    %99 = vmatpush2.msra.mxu0 0.0
    %100 = vmatprep.mubr.f32.mxu0 0.0
    %101 = vmatmul.mubr.f32.gmra.mxu0 %v34
    %v102 = vpop.f32.mrf.mxu0
    %v103 = vadd.f32 0.0, %v102
    %v104 = vpop.f32.mrf.mxu0
    %105 = vdwg.mxu0
    %107 = vrot.lane.b32.xlu0 %v31, 4
    %v108 = vpop.permute.xlu0 %107
    %vm110 = vcmask 31744
    %v111 = vsel %vm110, %v103, %v108
    %v112 = vld [vmem:[%s2] sm:$0xff]
    %v113 = vld [vmem:[%s3] sm:$0x1]
    %v115 = vlaneseq
    %v116 = vshrl.u32 %v115, 7
    %v117 = vsub.s32 0, %v116
    %v118 = vrot.slane %v113, %v117
    %v121 = vsel %vm32, %v111, 0
    %123 = vmatprep.subr.mxu0 0.0
    %124 = vmatpush1.msra.mxu0 0.0
    %125 = vmatprep.subr.mxu0 0.0
    %126 = vmatpush1.msra.mxu0 0.0
    %127 = vmatprep.subr.mxu0 0.0
    %128 = vmatpush1.msra.mxu0 0.0
    %129 = vmatprep.subr.mxu0 0.0
    %130 = vmatpush1.msra.mxu0 0.0
    %131 = vmatprep.subr.mxu0 0.0
    %132 = vmatpush1.msra.mxu0 0.0
    %133 = vmatprep.subr.mxu0 0.0
    %134 = vmatpush1.msra.mxu0 0.0
    %135 = vmatprep.subr.mxu0 0.0
    %136 = vmatpush1.msra.mxu0 0.0
    %137 = vmatprep.subr.mxu0 0.0
    %138 = vmatpush1.msra.mxu0 0.0
    %139 = vmatprep.subr.mxu0 0.0
    %140 = vmatpush1.msra.mxu0 0.0
    %141 = vmatprep.subr.mxu0 0.0
    %142 = vmatpush1.msra.mxu0 0.0
    %143 = vmatprep.subr.mxu0 0.0
    %144 = vmatpush1.msra.mxu0 0.0
    %145 = vmatprep.subr.mxu0 0.0
    %146 = vmatpush1.msra.mxu0 0.0
    %147 = vmatprep.subr.mxu0 0.0
    %148 = vmatpush1.msra.mxu0 0.0
    %149 = vmatprep.subr.mxu0 0.0
    %150 = vmatpush1.msra.mxu0 0.0
    %151 = vmatprep.subr.mxu0 0.0
    %152 = vmatpush1.msra.mxu0 0.0
    %153 = vmatprep.subr.mxu0 0.0
    %154 = vmatpush1.msra.mxu0 %v112
    %155 = vmatprep.subr.mxu0 0.0
    %156 = vmatpush2.msra.mxu0 0.0
    %157 = vmatprep.subr.mxu0 0.0
    %158 = vmatpush2.msra.mxu0 0.0
    %159 = vmatprep.subr.mxu0 0.0
    %160 = vmatpush2.msra.mxu0 0.0
    %161 = vmatprep.subr.mxu0 0.0
    %162 = vmatpush2.msra.mxu0 0.0
    %163 = vmatprep.subr.mxu0 0.0
    %164 = vmatpush2.msra.mxu0 0.0
    %165 = vmatprep.subr.mxu0 0.0
    %166 = vmatpush2.msra.mxu0 0.0
    %167 = vmatprep.subr.mxu0 0.0
    %168 = vmatpush2.msra.mxu0 0.0
    %169 = vmatprep.subr.mxu0 0.0
    %170 = vmatpush2.msra.mxu0 0.0
    %171 = vmatprep.subr.mxu0 0.0
    %172 = vmatpush2.msra.mxu0 0.0
    %173 = vmatprep.subr.mxu0 0.0
    %174 = vmatpush2.msra.mxu0 0.0
    %175 = vmatprep.subr.mxu0 0.0
    %176 = vmatpush2.msra.mxu0 0.0
    %177 = vmatprep.subr.mxu0 0.0
    %178 = vmatpush2.msra.mxu0 0.0
    %179 = vmatprep.subr.mxu0 0.0
    %180 = vmatpush2.msra.mxu0 0.0
    %181 = vmatprep.subr.mxu0 0.0
    %182 = vmatpush2.msra.mxu0 0.0
    %183 = vmatprep.subr.mxu0 0.0
    %184 = vmatpush2.msra.mxu0 0.0
    %185 = vmatprep.subr.mxu0 0.0
    %186 = vmatpush2.msra.mxu0 0.0
    %187 = vmatprep.mubr.f32.mxu0 0.0
    %188 = vmatmul.mubr.f32.gmra.mxu0 %v121
    %v189 = vpop.f32.mrf.mxu0
    %v190 = vadd.f32 %v118, %v189
    %v191 = vpop.f32.mrf.mxu0
    %192 = vdwg.mxu0
    %v193 = vmax.f32 %v190, 0.0
    %194 = vmatprep.subr.mxu0 0.0
    %195 = vmatpush1.msra.mxu0 0.0
    %196 = vmatprep.subr.mxu0 0.0
    %197 = vmatpush1.msra.mxu0 0.0
    %198 = vmatprep.subr.mxu0 0.0
    %199 = vmatpush1.msra.mxu0 0.0
    %200 = vmatprep.subr.mxu0 0.0
    %201 = vmatpush1.msra.mxu0 0.0
    %202 = vmatprep.subr.mxu0 0.0
    %203 = vmatpush1.msra.mxu0 0.0
    %204 = vmatprep.subr.mxu0 0.0
    %205 = vmatpush1.msra.mxu0 0.0
    %206 = vmatprep.subr.mxu0 0.0
    %207 = vmatpush1.msra.mxu0 0.0
    %208 = vmatprep.subr.mxu0 0.0
    %209 = vmatpush1.msra.mxu0 0.0
    %210 = vmatprep.subr.mxu0 0.0
    %211 = vmatpush1.msra.mxu0 0.0
    %212 = vmatprep.subr.mxu0 0.0
    %213 = vmatpush1.msra.mxu0 0.0
    %214 = vmatprep.subr.mxu0 0.0
    %215 = vmatpush1.msra.mxu0 0.0
    %216 = vmatprep.subr.mxu0 0.0
    %217 = vmatpush1.msra.mxu0 0.0
    %218 = vmatprep.subr.mxu0 0.0
    %219 = vmatpush1.msra.mxu0 0.0
    %220 = vmatprep.subr.mxu0 0.0
    %221 = vmatpush1.msra.mxu0 0.0
    %222 = vmatprep.subr.mxu0 0.0
    %223 = vmatpush1.msra.mxu0 0.0
    %224 = vmatprep.subr.mxu0 0.0
    %225 = vmatpush1.msra.mxu0 %v193
    %226 = vmatprep.subr.mxu0 0.0
    %227 = vmatpush2.msra.mxu0 0.0
    %228 = vmatprep.subr.mxu0 0.0
    %229 = vmatpush2.msra.mxu0 0.0
    %230 = vmatprep.subr.mxu0 0.0
    %231 = vmatpush2.msra.mxu0 0.0
    %232 = vmatprep.subr.mxu0 0.0
    %233 = vmatpush2.msra.mxu0 0.0
    %234 = vmatprep.subr.mxu0 0.0
    %235 = vmatpush2.msra.mxu0 0.0
    %236 = vmatprep.subr.mxu0 0.0
    %237 = vmatpush2.msra.mxu0 0.0
    %238 = vmatprep.subr.mxu0 0.0
    %239 = vmatpush2.msra.mxu0 0.0
    %240 = vmatprep.subr.mxu0 0.0
    %241 = vmatpush2.msra.mxu0 0.0
    %242 = vmatprep.subr.mxu0 0.0
    %243 = vmatpush2.msra.mxu0 0.0
    %244 = vmatprep.subr.mxu0 0.0
    %245 = vmatpush2.msra.mxu0 0.0
    %246 = vmatprep.subr.mxu0 0.0
    %247 = vmatpush2.msra.mxu0 0.0
    %248 = vmatprep.subr.mxu0 0.0
    %249 = vmatpush2.msra.mxu0 0.0
    %250 = vmatprep.subr.mxu0 0.0
    %251 = vmatpush2.msra.mxu0 0.0
    %252 = vmatprep.subr.mxu0 0.0
    %253 = vmatpush2.msra.mxu0 0.0
    %254 = vmatprep.subr.mxu0 0.0
    %255 = vmatpush2.msra.mxu0 0.0
    %256 = vmatprep.subr.mxu0 0.0
    %257 = vmatpush2.msra.mxu0 0.0
    %258 = vmatprep.mubr.f32.mxu0 0.0
    %259 = vmatmul.mubr.f32.gmra.mxu0 %v34
    %v260 = vpop.f32.mrf.mxu0
    %v261 = vadd.f32 0.0, %v260
    %v262 = vpop.f32.mrf.mxu0
    %263 = vdwg.mxu0
    %265 = vrot.lane.b32.xlu0 %v193, 16
    %v266 = vpop.permute.xlu0 %265
    %vm268 = vcmask 130048
    %v269 = vsel %vm268, %v261, %v266
    %v270 = vld [vmem:[%s4] sm:$0xff]
    %v271 = vld [vmem:[%s4 + $0x8] sm:$0xff]
    %v272 = vld [vmem:[%s4 + $0x10] sm:$0xff]
    %v273 = vld [vmem:[%s4 + $0x18] sm:$0xff]
    %v274 = vld [vmem:[%s5] sm:$0x1]
    %v276 = vlaneseq
    %v277 = vshrl.u32 %v276, 7
    %v278 = vsub.s32 0, %v277
    %v279 = vrot.slane %v274, %v278
    %vm281 = vcmask 261120
    %v283 = vsel %vm281, %v269, 0
    %285 = vmatprep.subr.mxu0 0.0
    %286 = vmatpush1.msra.mxu0 0.0
    %287 = vmatprep.subr.mxu0 0.0
    %288 = vmatpush1.msra.mxu0 0.0
    %289 = vmatprep.subr.mxu0 0.0
    %290 = vmatpush1.msra.mxu0 0.0
    %291 = vmatprep.subr.mxu0 0.0
    %292 = vmatpush1.msra.mxu0 0.0
    %293 = vmatprep.subr.mxu0 0.0
    %294 = vmatpush1.msra.mxu0 0.0
    %295 = vmatprep.subr.mxu0 0.0
    %296 = vmatpush1.msra.mxu0 0.0
    %297 = vmatprep.subr.mxu0 0.0
    %298 = vmatpush1.msra.mxu0 0.0
    %299 = vmatprep.subr.mxu0 0.0
    %300 = vmatpush1.msra.mxu0 0.0
    %301 = vmatprep.subr.mxu0 0.0
    %302 = vmatpush1.msra.mxu0 0.0
    %303 = vmatprep.subr.mxu0 0.0
    %304 = vmatpush1.msra.mxu0 0.0
    %305 = vmatprep.subr.mxu0 0.0
    %306 = vmatpush1.msra.mxu0 0.0
    %307 = vmatprep.subr.mxu0 0.0
    %308 = vmatpush1.msra.mxu0 0.0
    %309 = vmatprep.subr.mxu0 0.0
    %310 = vmatpush1.msra.mxu0 %v273
    %311 = vmatprep.subr.mxu0 0.0
    %312 = vmatpush1.msra.mxu0 %v272
    %313 = vmatprep.subr.mxu0 0.0
    %314 = vmatpush1.msra.mxu0 %v271
    %315 = vmatprep.subr.mxu0 0.0
    %316 = vmatpush1.msra.mxu0 %v270
    %317 = vmatprep.subr.mxu0 0.0
    %318 = vmatpush2.msra.mxu0 0.0
    %319 = vmatprep.subr.mxu0 0.0
    %320 = vmatpush2.msra.mxu0 0.0
    %321 = vmatprep.subr.mxu0 0.0
    %322 = vmatpush2.msra.mxu0 0.0
    %323 = vmatprep.subr.mxu0 0.0
    %324 = vmatpush2.msra.mxu0 0.0
    %325 = vmatprep.subr.mxu0 0.0
    %326 = vmatpush2.msra.mxu0 0.0
    %327 = vmatprep.subr.mxu0 0.0
    %328 = vmatpush2.msra.mxu0 0.0
    %329 = vmatprep.subr.mxu0 0.0
    %330 = vmatpush2.msra.mxu0 0.0
    %331 = vmatprep.subr.mxu0 0.0
    %332 = vmatpush2.msra.mxu0 0.0
    %333 = vmatprep.subr.mxu0 0.0
    %334 = vmatpush2.msra.mxu0 0.0
    %335 = vmatprep.subr.mxu0 0.0
    %336 = vmatpush2.msra.mxu0 0.0
    %337 = vmatprep.subr.mxu0 0.0
    %338 = vmatpush2.msra.mxu0 0.0
    %339 = vmatprep.subr.mxu0 0.0
    %340 = vmatpush2.msra.mxu0 0.0
    %341 = vmatprep.subr.mxu0 0.0
    %342 = vmatpush2.msra.mxu0 0.0
    %343 = vmatprep.subr.mxu0 0.0
    %344 = vmatpush2.msra.mxu0 0.0
    %345 = vmatprep.subr.mxu0 0.0
    %346 = vmatpush2.msra.mxu0 0.0
    %347 = vmatprep.subr.mxu0 0.0
    %348 = vmatpush2.msra.mxu0 0.0
    %349 = vmatprep.mubr.f32.mxu0 0.0
    %350 = vmatmul.mubr.f32.gmra.mxu0 %v283
    %v351 = vpop.f32.mrf.mxu0
    %v352 = vadd.f32 %v279, %v351
    %v353 = vpop.f32.mrf.mxu0
    %354 = vdwg.mxu0
    %v355 = vmax.f32 %v352, 0.0
    %356 = vmatprep.subr.mxu0 0.0
    %357 = vmatpush1.msra.mxu0 0.0
    %358 = vmatprep.subr.mxu0 0.0
    %359 = vmatpush1.msra.mxu0 0.0
    %360 = vmatprep.subr.mxu0 0.0
    %361 = vmatpush1.msra.mxu0 0.0
    %362 = vmatprep.subr.mxu0 0.0
    %363 = vmatpush1.msra.mxu0 0.0
    %364 = vmatprep.subr.mxu0 0.0
    %365 = vmatpush1.msra.mxu0 0.0
    %366 = vmatprep.subr.mxu0 0.0
    %367 = vmatpush1.msra.mxu0 0.0
    %368 = vmatprep.subr.mxu0 0.0
    %369 = vmatpush1.msra.mxu0 0.0
    %370 = vmatprep.subr.mxu0 0.0
    %371 = vmatpush1.msra.mxu0 0.0
    %372 = vmatprep.subr.mxu0 0.0
    %373 = vmatpush1.msra.mxu0 0.0
    %374 = vmatprep.subr.mxu0 0.0
    %375 = vmatpush1.msra.mxu0 0.0
    %376 = vmatprep.subr.mxu0 0.0
    %377 = vmatpush1.msra.mxu0 0.0
    %378 = vmatprep.subr.mxu0 0.0
    %379 = vmatpush1.msra.mxu0 0.0
    %380 = vmatprep.subr.mxu0 0.0
    %381 = vmatpush1.msra.mxu0 0.0
    %382 = vmatprep.subr.mxu0 0.0
    %383 = vmatpush1.msra.mxu0 0.0
    %384 = vmatprep.subr.mxu0 0.0
    %385 = vmatpush1.msra.mxu0 0.0
    %386 = vmatprep.subr.mxu0 0.0
    %387 = vmatpush1.msra.mxu0 %v355
    %388 = vmatprep.subr.mxu0 0.0
    %389 = vmatpush2.msra.mxu0 0.0
    %390 = vmatprep.subr.mxu0 0.0
    %391 = vmatpush2.msra.mxu0 0.0
    %392 = vmatprep.subr.mxu0 0.0
    %393 = vmatpush2.msra.mxu0 0.0
    %394 = vmatprep.subr.mxu0 0.0
    %395 = vmatpush2.msra.mxu0 0.0
    %396 = vmatprep.subr.mxu0 0.0
    %397 = vmatpush2.msra.mxu0 0.0
    %398 = vmatprep.subr.mxu0 0.0
    %399 = vmatpush2.msra.mxu0 0.0
    %400 = vmatprep.subr.mxu0 0.0
    %401 = vmatpush2.msra.mxu0 0.0
    %402 = vmatprep.subr.mxu0 0.0
    %403 = vmatpush2.msra.mxu0 0.0
    %404 = vmatprep.subr.mxu0 0.0
    %405 = vmatpush2.msra.mxu0 0.0
    %406 = vmatprep.subr.mxu0 0.0
    %407 = vmatpush2.msra.mxu0 0.0
    %408 = vmatprep.subr.mxu0 0.0
    %409 = vmatpush2.msra.mxu0 0.0
    %410 = vmatprep.subr.mxu0 0.0
    %411 = vmatpush2.msra.mxu0 0.0
    %412 = vmatprep.subr.mxu0 0.0
    %413 = vmatpush2.msra.mxu0 0.0
    %414 = vmatprep.subr.mxu0 0.0
    %415 = vmatpush2.msra.mxu0 0.0
    %416 = vmatprep.subr.mxu0 0.0
    %417 = vmatpush2.msra.mxu0 0.0
    %418 = vmatprep.subr.mxu0 0.0
    %419 = vmatpush2.msra.mxu0 0.0
    %420 = vmatprep.mubr.f32.mxu0 0.0
    %421 = vmatmul.mubr.f32.gmra.mxu0 %v34
    %v422 = vpop.f32.mrf.mxu0
    %v423 = vadd.f32 0.0, %v422
    %v424 = vpop.f32.mrf.mxu0
    %425 = vdwg.mxu0
    %427 = vrot.lane.b32.xlu0 %v355, 16
    %v428 = vpop.permute.xlu0 %427
    %v430 = vsel %vm268, %v423, %v428
    %s431 = scalar_lea.vmem %s4, 32
    %v432 = vld [vmem:[%s431] sm:$0xff]
    %v433 = vld [vmem:[%s431 + $0x8] sm:$0xff]
    %v434 = vld [vmem:[%s431 + $0x10] sm:$0xff]
    %v435 = vld [vmem:[%s431 + $0x18] sm:$0xff]
    %s436 = scalar_lea.vmem %s5, 1
    %v437 = vld [vmem:[%s436] sm:$0x1]
    %v439 = vlaneseq
    %v440 = vshrl.u32 %v439, 7
    %v441 = vsub.s32 0, %v440
    %v442 = vrot.slane %v437, %v441
    %v445 = vsel %vm281, %v430, 0
    %447 = vmatprep.subr.mxu0 0.0
    %448 = vmatpush1.msra.mxu0 0.0
    %449 = vmatprep.subr.mxu0 0.0
    %450 = vmatpush1.msra.mxu0 0.0
    %451 = vmatprep.subr.mxu0 0.0
    %452 = vmatpush1.msra.mxu0 0.0
    %453 = vmatprep.subr.mxu0 0.0
    %454 = vmatpush1.msra.mxu0 0.0
    %455 = vmatprep.subr.mxu0 0.0
    %456 = vmatpush1.msra.mxu0 0.0
    %457 = vmatprep.subr.mxu0 0.0
    %458 = vmatpush1.msra.mxu0 0.0
    %459 = vmatprep.subr.mxu0 0.0
    %460 = vmatpush1.msra.mxu0 0.0
    %461 = vmatprep.subr.mxu0 0.0
    %462 = vmatpush1.msra.mxu0 0.0
    %463 = vmatprep.subr.mxu0 0.0
    %464 = vmatpush1.msra.mxu0 0.0
    %465 = vmatprep.subr.mxu0 0.0
    %466 = vmatpush1.msra.mxu0 0.0
    %467 = vmatprep.subr.mxu0 0.0
    %468 = vmatpush1.msra.mxu0 0.0
    %469 = vmatprep.subr.mxu0 0.0
    %470 = vmatpush1.msra.mxu0 0.0
    %471 = vmatprep.subr.mxu0 0.0
    %472 = vmatpush1.msra.mxu0 %v435
    %473 = vmatprep.subr.mxu0 0.0
    %474 = vmatpush1.msra.mxu0 %v434
    %475 = vmatprep.subr.mxu0 0.0
    %476 = vmatpush1.msra.mxu0 %v433
    %477 = vmatprep.subr.mxu0 0.0
    %478 = vmatpush1.msra.mxu0 %v432
    %479 = vmatprep.subr.mxu0 0.0
    %480 = vmatpush2.msra.mxu0 0.0
    %481 = vmatprep.subr.mxu0 0.0
    %482 = vmatpush2.msra.mxu0 0.0
    %483 = vmatprep.subr.mxu0 0.0
    %484 = vmatpush2.msra.mxu0 0.0
    %485 = vmatprep.subr.mxu0 0.0
    %486 = vmatpush2.msra.mxu0 0.0
    %487 = vmatprep.subr.mxu0 0.0
    %488 = vmatpush2.msra.mxu0 0.0
    %489 = vmatprep.subr.mxu0 0.0
    %490 = vmatpush2.msra.mxu0 0.0
    %491 = vmatprep.subr.mxu0 0.0
    %492 = vmatpush2.msra.mxu0 0.0
    %493 = vmatprep.subr.mxu0 0.0
    %494 = vmatpush2.msra.mxu0 0.0
    %495 = vmatprep.subr.mxu0 0.0
    %496 = vmatpush2.msra.mxu0 0.0
    %497 = vmatprep.subr.mxu0 0.0
    %498 = vmatpush2.msra.mxu0 0.0
    %499 = vmatprep.subr.mxu0 0.0
    %500 = vmatpush2.msra.mxu0 0.0
    %501 = vmatprep.subr.mxu0 0.0
    %502 = vmatpush2.msra.mxu0 0.0
    %503 = vmatprep.subr.mxu0 0.0
    %504 = vmatpush2.msra.mxu0 0.0
    %505 = vmatprep.subr.mxu0 0.0
    %506 = vmatpush2.msra.mxu0 0.0
    %507 = vmatprep.subr.mxu0 0.0
    %508 = vmatpush2.msra.mxu0 0.0
    %509 = vmatprep.subr.mxu0 0.0
    %510 = vmatpush2.msra.mxu0 0.0
    %511 = vmatprep.mubr.f32.mxu0 0.0
    %512 = vmatmul.mubr.f32.gmra.mxu0 %v445
    %v513 = vpop.f32.mrf.mxu0
    %v514 = vadd.f32 %v442, %v513
    %v515 = vpop.f32.mrf.mxu0
    %516 = vdwg.mxu0
    %v517 = vmax.f32 %v514, 0.0
    %518 = vmatprep.subr.mxu0 0.0
    %519 = vmatpush1.msra.mxu0 0.0
    %520 = vmatprep.subr.mxu0 0.0
    %521 = vmatpush1.msra.mxu0 0.0
    %522 = vmatprep.subr.mxu0 0.0
    %523 = vmatpush1.msra.mxu0 0.0
    %524 = vmatprep.subr.mxu0 0.0
    %525 = vmatpush1.msra.mxu0 0.0
    %526 = vmatprep.subr.mxu0 0.0
    %527 = vmatpush1.msra.mxu0 0.0
    %528 = vmatprep.subr.mxu0 0.0
    %529 = vmatpush1.msra.mxu0 0.0
    %530 = vmatprep.subr.mxu0 0.0
    %531 = vmatpush1.msra.mxu0 0.0
    %532 = vmatprep.subr.mxu0 0.0
    %533 = vmatpush1.msra.mxu0 0.0
    %534 = vmatprep.subr.mxu0 0.0
    %535 = vmatpush1.msra.mxu0 0.0
    %536 = vmatprep.subr.mxu0 0.0
    %537 = vmatpush1.msra.mxu0 0.0
    %538 = vmatprep.subr.mxu0 0.0
    %539 = vmatpush1.msra.mxu0 0.0
    %540 = vmatprep.subr.mxu0 0.0
    %541 = vmatpush1.msra.mxu0 0.0
    %542 = vmatprep.subr.mxu0 0.0
    %543 = vmatpush1.msra.mxu0 0.0
    %544 = vmatprep.subr.mxu0 0.0
    %545 = vmatpush1.msra.mxu0 0.0
    %546 = vmatprep.subr.mxu0 0.0
    %547 = vmatpush1.msra.mxu0 0.0
    %548 = vmatprep.subr.mxu0 0.0
    %549 = vmatpush1.msra.mxu0 %v517
    %550 = vmatprep.subr.mxu0 0.0
    %551 = vmatpush2.msra.mxu0 0.0
    %552 = vmatprep.subr.mxu0 0.0
    %553 = vmatpush2.msra.mxu0 0.0
    %554 = vmatprep.subr.mxu0 0.0
    %555 = vmatpush2.msra.mxu0 0.0
    %556 = vmatprep.subr.mxu0 0.0
    %557 = vmatpush2.msra.mxu0 0.0
    %558 = vmatprep.subr.mxu0 0.0
    %559 = vmatpush2.msra.mxu0 0.0
    %560 = vmatprep.subr.mxu0 0.0
    %561 = vmatpush2.msra.mxu0 0.0
    %562 = vmatprep.subr.mxu0 0.0
    %563 = vmatpush2.msra.mxu0 0.0
    %564 = vmatprep.subr.mxu0 0.0
    %565 = vmatpush2.msra.mxu0 0.0
    %566 = vmatprep.subr.mxu0 0.0
    %567 = vmatpush2.msra.mxu0 0.0
    %568 = vmatprep.subr.mxu0 0.0
    %569 = vmatpush2.msra.mxu0 0.0
    %570 = vmatprep.subr.mxu0 0.0
    %571 = vmatpush2.msra.mxu0 0.0
    %572 = vmatprep.subr.mxu0 0.0
    %573 = vmatpush2.msra.mxu0 0.0
    %574 = vmatprep.subr.mxu0 0.0
    %575 = vmatpush2.msra.mxu0 0.0
    %576 = vmatprep.subr.mxu0 0.0
    %577 = vmatpush2.msra.mxu0 0.0
    %578 = vmatprep.subr.mxu0 0.0
    %579 = vmatpush2.msra.mxu0 0.0
    %580 = vmatprep.subr.mxu0 0.0
    %581 = vmatpush2.msra.mxu0 0.0
    %582 = vmatprep.mubr.f32.mxu0 0.0
    %583 = vmatmul.mubr.f32.gmra.mxu0 %v34
    %v584 = vpop.f32.mrf.mxu0
    %v585 = vadd.f32 0.0, %v584
    %v586 = vpop.f32.mrf.mxu0
    %587 = vdwg.mxu0
    %589 = vrot.lane.b32.xlu0 %v517, 16
    %v590 = vpop.permute.xlu0 %589
    %v592 = vsel %vm268, %v585, %v590
    %s593 = scalar_lea.vmem %s4, 64
    %v594 = vld [vmem:[%s593] sm:$0xff]
    %v595 = vld [vmem:[%s593 + $0x8] sm:$0xff]
    %v596 = vld [vmem:[%s593 + $0x10] sm:$0xff]
    %v597 = vld [vmem:[%s593 + $0x18] sm:$0xff]
    %s598 = scalar_lea.vmem %s5, 2
    %v599 = vld [vmem:[%s598] sm:$0x1]
    %v601 = vlaneseq
    %v602 = vshrl.u32 %v601, 7
    %v603 = vsub.s32 0, %v602
    %v604 = vrot.slane %v599, %v603
    %v607 = vsel %vm281, %v592, 0
    %609 = vmatprep.subr.mxu0 0.0
    %610 = vmatpush1.msra.mxu0 0.0
    %611 = vmatprep.subr.mxu0 0.0
    %612 = vmatpush1.msra.mxu0 0.0
    %613 = vmatprep.subr.mxu0 0.0
    %614 = vmatpush1.msra.mxu0 0.0
    %615 = vmatprep.subr.mxu0 0.0
    %616 = vmatpush1.msra.mxu0 0.0
    %617 = vmatprep.subr.mxu0 0.0
    %618 = vmatpush1.msra.mxu0 0.0
    %619 = vmatprep.subr.mxu0 0.0
    %620 = vmatpush1.msra.mxu0 0.0
    %621 = vmatprep.subr.mxu0 0.0
    %622 = vmatpush1.msra.mxu0 0.0
    %623 = vmatprep.subr.mxu0 0.0
    %624 = vmatpush1.msra.mxu0 0.0
    %625 = vmatprep.subr.mxu0 0.0
    %626 = vmatpush1.msra.mxu0 0.0
    %627 = vmatprep.subr.mxu0 0.0
    %628 = vmatpush1.msra.mxu0 0.0
    %629 = vmatprep.subr.mxu0 0.0
    %630 = vmatpush1.msra.mxu0 0.0
    %631 = vmatprep.subr.mxu0 0.0
    %632 = vmatpush1.msra.mxu0 0.0
    %633 = vmatprep.subr.mxu0 0.0
    %634 = vmatpush1.msra.mxu0 %v597
    %635 = vmatprep.subr.mxu0 0.0
    %636 = vmatpush1.msra.mxu0 %v596
    %637 = vmatprep.subr.mxu0 0.0
    %638 = vmatpush1.msra.mxu0 %v595
    %639 = vmatprep.subr.mxu0 0.0
    %640 = vmatpush1.msra.mxu0 %v594
    %641 = vmatprep.subr.mxu0 0.0
    %642 = vmatpush2.msra.mxu0 0.0
    %643 = vmatprep.subr.mxu0 0.0
    %644 = vmatpush2.msra.mxu0 0.0
    %645 = vmatprep.subr.mxu0 0.0
    %646 = vmatpush2.msra.mxu0 0.0
    %647 = vmatprep.subr.mxu0 0.0
    %648 = vmatpush2.msra.mxu0 0.0
    %649 = vmatprep.subr.mxu0 0.0
    %650 = vmatpush2.msra.mxu0 0.0
    %651 = vmatprep.subr.mxu0 0.0
    %652 = vmatpush2.msra.mxu0 0.0
    %653 = vmatprep.subr.mxu0 0.0
    %654 = vmatpush2.msra.mxu0 0.0
    %655 = vmatprep.subr.mxu0 0.0
    %656 = vmatpush2.msra.mxu0 0.0
    %657 = vmatprep.subr.mxu0 0.0
    %658 = vmatpush2.msra.mxu0 0.0
    %659 = vmatprep.subr.mxu0 0.0
    %660 = vmatpush2.msra.mxu0 0.0
    %661 = vmatprep.subr.mxu0 0.0
    %662 = vmatpush2.msra.mxu0 0.0
    %663 = vmatprep.subr.mxu0 0.0
    %664 = vmatpush2.msra.mxu0 0.0
    %665 = vmatprep.subr.mxu0 0.0
    %666 = vmatpush2.msra.mxu0 0.0
    %667 = vmatprep.subr.mxu0 0.0
    %668 = vmatpush2.msra.mxu0 0.0
    %669 = vmatprep.subr.mxu0 0.0
    %670 = vmatpush2.msra.mxu0 0.0
    %671 = vmatprep.subr.mxu0 0.0
    %672 = vmatpush2.msra.mxu0 0.0
    %673 = vmatprep.mubr.f32.mxu0 0.0
    %674 = vmatmul.mubr.f32.gmra.mxu0 %v607
    %v675 = vpop.f32.mrf.mxu0
    %v676 = vadd.f32 %v604, %v675
    %v677 = vpop.f32.mrf.mxu0
    %678 = vdwg.mxu0
    %v679 = vmax.f32 %v676, 0.0
    %680 = vmatprep.subr.mxu0 0.0
    %681 = vmatpush1.msra.mxu0 0.0
    %682 = vmatprep.subr.mxu0 0.0
    %683 = vmatpush1.msra.mxu0 0.0
    %684 = vmatprep.subr.mxu0 0.0
    %685 = vmatpush1.msra.mxu0 0.0
    %686 = vmatprep.subr.mxu0 0.0
    %687 = vmatpush1.msra.mxu0 0.0
    %688 = vmatprep.subr.mxu0 0.0
    %689 = vmatpush1.msra.mxu0 0.0
    %690 = vmatprep.subr.mxu0 0.0
    %691 = vmatpush1.msra.mxu0 0.0
    %692 = vmatprep.subr.mxu0 0.0
    %693 = vmatpush1.msra.mxu0 0.0
    %694 = vmatprep.subr.mxu0 0.0
    %695 = vmatpush1.msra.mxu0 0.0
    %696 = vmatprep.subr.mxu0 0.0
    %697 = vmatpush1.msra.mxu0 0.0
    %698 = vmatprep.subr.mxu0 0.0
    %699 = vmatpush1.msra.mxu0 0.0
    %700 = vmatprep.subr.mxu0 0.0
    %701 = vmatpush1.msra.mxu0 0.0
    %702 = vmatprep.subr.mxu0 0.0
    %703 = vmatpush1.msra.mxu0 0.0
    %704 = vmatprep.subr.mxu0 0.0
    %705 = vmatpush1.msra.mxu0 0.0
    %706 = vmatprep.subr.mxu0 0.0
    %707 = vmatpush1.msra.mxu0 0.0
    %708 = vmatprep.subr.mxu0 0.0
    %709 = vmatpush1.msra.mxu0 0.0
    %710 = vmatprep.subr.mxu0 0.0
    %711 = vmatpush1.msra.mxu0 %v679
    %712 = vmatprep.subr.mxu0 0.0
    %713 = vmatpush2.msra.mxu0 0.0
    %714 = vmatprep.subr.mxu0 0.0
    %715 = vmatpush2.msra.mxu0 0.0
    %716 = vmatprep.subr.mxu0 0.0
    %717 = vmatpush2.msra.mxu0 0.0
    %718 = vmatprep.subr.mxu0 0.0
    %719 = vmatpush2.msra.mxu0 0.0
    %720 = vmatprep.subr.mxu0 0.0
    %721 = vmatpush2.msra.mxu0 0.0
    %722 = vmatprep.subr.mxu0 0.0
    %723 = vmatpush2.msra.mxu0 0.0
    %724 = vmatprep.subr.mxu0 0.0
    %725 = vmatpush2.msra.mxu0 0.0
    %726 = vmatprep.subr.mxu0 0.0
    %727 = vmatpush2.msra.mxu0 0.0
    %728 = vmatprep.subr.mxu0 0.0
    %729 = vmatpush2.msra.mxu0 0.0
    %730 = vmatprep.subr.mxu0 0.0
    %731 = vmatpush2.msra.mxu0 0.0
    %732 = vmatprep.subr.mxu0 0.0
    %733 = vmatpush2.msra.mxu0 0.0
    %734 = vmatprep.subr.mxu0 0.0
    %735 = vmatpush2.msra.mxu0 0.0
    %736 = vmatprep.subr.mxu0 0.0
    %737 = vmatpush2.msra.mxu0 0.0
    %738 = vmatprep.subr.mxu0 0.0
    %739 = vmatpush2.msra.mxu0 0.0
    %740 = vmatprep.subr.mxu0 0.0
    %741 = vmatpush2.msra.mxu0 0.0
    %742 = vmatprep.subr.mxu0 0.0
    %743 = vmatpush2.msra.mxu0 0.0
    %744 = vmatprep.mubr.f32.mxu0 0.0
    %745 = vmatmul.mubr.f32.gmra.mxu0 %v34
    %v746 = vpop.f32.mrf.mxu0
    %v747 = vadd.f32 0.0, %v746
    %v748 = vpop.f32.mrf.mxu0
    %749 = vdwg.mxu0
    %751 = vrot.lane.b32.xlu0 %v679, 16
    %v752 = vpop.permute.xlu0 %751
    %v754 = vsel %vm268, %v747, %v752
    %s755 = scalar_lea.vmem %s4, 96
    %v756 = vld [vmem:[%s755] sm:$0xff]
    %v757 = vld [vmem:[%s755 + $0x8] sm:$0xff]
    %v758 = vld [vmem:[%s755 + $0x10] sm:$0xff]
    %v759 = vld [vmem:[%s755 + $0x18] sm:$0xff]
    %s760 = scalar_lea.vmem %s5, 3
    %v761 = vld [vmem:[%s760] sm:$0x1]
    %v763 = vlaneseq
    %v764 = vshrl.u32 %v763, 7
    %v765 = vsub.s32 0, %v764
    %v766 = vrot.slane %v761, %v765
    %v769 = vsel %vm281, %v754, 0
    %771 = vmatprep.subr.mxu0 0.0
    %772 = vmatpush1.msra.mxu0 0.0
    %773 = vmatprep.subr.mxu0 0.0
    %774 = vmatpush1.msra.mxu0 0.0
    %775 = vmatprep.subr.mxu0 0.0
    %776 = vmatpush1.msra.mxu0 0.0
    %777 = vmatprep.subr.mxu0 0.0
    %778 = vmatpush1.msra.mxu0 0.0
    %779 = vmatprep.subr.mxu0 0.0
    %780 = vmatpush1.msra.mxu0 0.0
    %781 = vmatprep.subr.mxu0 0.0
    %782 = vmatpush1.msra.mxu0 0.0
    %783 = vmatprep.subr.mxu0 0.0
    %784 = vmatpush1.msra.mxu0 0.0
    %785 = vmatprep.subr.mxu0 0.0
    %786 = vmatpush1.msra.mxu0 0.0
    %787 = vmatprep.subr.mxu0 0.0
    %788 = vmatpush1.msra.mxu0 0.0
    %789 = vmatprep.subr.mxu0 0.0
    %790 = vmatpush1.msra.mxu0 0.0
    %791 = vmatprep.subr.mxu0 0.0
    %792 = vmatpush1.msra.mxu0 0.0
    %793 = vmatprep.subr.mxu0 0.0
    %794 = vmatpush1.msra.mxu0 0.0
    %795 = vmatprep.subr.mxu0 0.0
    %796 = vmatpush1.msra.mxu0 %v759
    %797 = vmatprep.subr.mxu0 0.0
    %798 = vmatpush1.msra.mxu0 %v758
    %799 = vmatprep.subr.mxu0 0.0
    %800 = vmatpush1.msra.mxu0 %v757
    %801 = vmatprep.subr.mxu0 0.0
    %802 = vmatpush1.msra.mxu0 %v756
    %803 = vmatprep.subr.mxu0 0.0
    %804 = vmatpush2.msra.mxu0 0.0
    %805 = vmatprep.subr.mxu0 0.0
    %806 = vmatpush2.msra.mxu0 0.0
    %807 = vmatprep.subr.mxu0 0.0
    %808 = vmatpush2.msra.mxu0 0.0
    %809 = vmatprep.subr.mxu0 0.0
    %810 = vmatpush2.msra.mxu0 0.0
    %811 = vmatprep.subr.mxu0 0.0
    %812 = vmatpush2.msra.mxu0 0.0
    %813 = vmatprep.subr.mxu0 0.0
    %814 = vmatpush2.msra.mxu0 0.0
    %815 = vmatprep.subr.mxu0 0.0
    %816 = vmatpush2.msra.mxu0 0.0
    %817 = vmatprep.subr.mxu0 0.0
    %818 = vmatpush2.msra.mxu0 0.0
    %819 = vmatprep.subr.mxu0 0.0
    %820 = vmatpush2.msra.mxu0 0.0
    %821 = vmatprep.subr.mxu0 0.0
    %822 = vmatpush2.msra.mxu0 0.0
    %823 = vmatprep.subr.mxu0 0.0
    %824 = vmatpush2.msra.mxu0 0.0
    %825 = vmatprep.subr.mxu0 0.0
    %826 = vmatpush2.msra.mxu0 0.0
    %827 = vmatprep.subr.mxu0 0.0
    %828 = vmatpush2.msra.mxu0 0.0
    %829 = vmatprep.subr.mxu0 0.0
    %830 = vmatpush2.msra.mxu0 0.0
    %831 = vmatprep.subr.mxu0 0.0
    %832 = vmatpush2.msra.mxu0 0.0
    %833 = vmatprep.subr.mxu0 0.0
    %834 = vmatpush2.msra.mxu0 0.0
    %835 = vmatprep.mubr.f32.mxu0 0.0
    %836 = vmatmul.mubr.f32.gmra.mxu0 %v769
    %v837 = vpop.f32.mrf.mxu0
    %v838 = vadd.f32 %v766, %v837
    %v839 = vpop.f32.mrf.mxu0
    %840 = vdwg.mxu0
    %v841 = vmax.f32 %v838, 0.0
    %842 = vmatprep.subr.mxu0 0.0
    %843 = vmatpush1.msra.mxu0 0.0
    %844 = vmatprep.subr.mxu0 0.0
    %845 = vmatpush1.msra.mxu0 0.0
    %846 = vmatprep.subr.mxu0 0.0
    %847 = vmatpush1.msra.mxu0 0.0
    %848 = vmatprep.subr.mxu0 0.0
    %849 = vmatpush1.msra.mxu0 0.0
    %850 = vmatprep.subr.mxu0 0.0
    %851 = vmatpush1.msra.mxu0 0.0
    %852 = vmatprep.subr.mxu0 0.0
    %853 = vmatpush1.msra.mxu0 0.0
    %854 = vmatprep.subr.mxu0 0.0
    %855 = vmatpush1.msra.mxu0 0.0
    %856 = vmatprep.subr.mxu0 0.0
    %857 = vmatpush1.msra.mxu0 0.0
    %858 = vmatprep.subr.mxu0 0.0
    %859 = vmatpush1.msra.mxu0 0.0
    %860 = vmatprep.subr.mxu0 0.0
    %861 = vmatpush1.msra.mxu0 0.0
    %862 = vmatprep.subr.mxu0 0.0
    %863 = vmatpush1.msra.mxu0 0.0
    %864 = vmatprep.subr.mxu0 0.0
    %865 = vmatpush1.msra.mxu0 0.0
    %866 = vmatprep.subr.mxu0 0.0
    %867 = vmatpush1.msra.mxu0 0.0
    %868 = vmatprep.subr.mxu0 0.0
    %869 = vmatpush1.msra.mxu0 0.0
    %870 = vmatprep.subr.mxu0 0.0
    %871 = vmatpush1.msra.mxu0 0.0
    %872 = vmatprep.subr.mxu0 0.0
    %873 = vmatpush1.msra.mxu0 %v841
    %874 = vmatprep.subr.mxu0 0.0
    %875 = vmatpush2.msra.mxu0 0.0
    %876 = vmatprep.subr.mxu0 0.0
    %877 = vmatpush2.msra.mxu0 0.0
    %878 = vmatprep.subr.mxu0 0.0
    %879 = vmatpush2.msra.mxu0 0.0
    %880 = vmatprep.subr.mxu0 0.0
    %881 = vmatpush2.msra.mxu0 0.0
    %882 = vmatprep.subr.mxu0 0.0
    %883 = vmatpush2.msra.mxu0 0.0
    %884 = vmatprep.subr.mxu0 0.0
    %885 = vmatpush2.msra.mxu0 0.0
    %886 = vmatprep.subr.mxu0 0.0
    %887 = vmatpush2.msra.mxu0 0.0
    %888 = vmatprep.subr.mxu0 0.0
    %889 = vmatpush2.msra.mxu0 0.0
    %890 = vmatprep.subr.mxu0 0.0
    %891 = vmatpush2.msra.mxu0 0.0
    %892 = vmatprep.subr.mxu0 0.0
    %893 = vmatpush2.msra.mxu0 0.0
    %894 = vmatprep.subr.mxu0 0.0
    %895 = vmatpush2.msra.mxu0 0.0
    %896 = vmatprep.subr.mxu0 0.0
    %897 = vmatpush2.msra.mxu0 0.0
    %898 = vmatprep.subr.mxu0 0.0
    %899 = vmatpush2.msra.mxu0 0.0
    %900 = vmatprep.subr.mxu0 0.0
    %901 = vmatpush2.msra.mxu0 0.0
    %902 = vmatprep.subr.mxu0 0.0
    %903 = vmatpush2.msra.mxu0 0.0
    %904 = vmatprep.subr.mxu0 0.0
    %905 = vmatpush2.msra.mxu0 0.0
    %906 = vmatprep.mubr.f32.mxu0 0.0
    %907 = vmatmul.mubr.f32.gmra.mxu0 %v34
    %v908 = vpop.f32.mrf.mxu0
    %v909 = vadd.f32 0.0, %v908
    %v910 = vpop.f32.mrf.mxu0
    %911 = vdwg.mxu0
    %913 = vrot.lane.b32.xlu0 %v841, 16
    %v914 = vpop.permute.xlu0 %913
    %v916 = vsel %vm268, %v909, %v914
    %s917 = scalar_lea.vmem %s4, 128
    %v918 = vld [vmem:[%s917] sm:$0xff]
    %v919 = vld [vmem:[%s917 + $0x8] sm:$0xff]
    %v920 = vld [vmem:[%s917 + $0x10] sm:$0xff]
    %v921 = vld [vmem:[%s917 + $0x18] sm:$0xff]
    %s922 = scalar_lea.vmem %s5, 4
    %v923 = vld [vmem:[%s922] sm:$0x1]
    %v925 = vlaneseq
    %v926 = vshrl.u32 %v925, 7
    %v927 = vsub.s32 0, %v926
    %v928 = vrot.slane %v923, %v927
    %v931 = vsel %vm281, %v916, 0
    %933 = vmatprep.subr.mxu0 0.0
    %934 = vmatpush1.msra.mxu0 0.0
    %935 = vmatprep.subr.mxu0 0.0
    %936 = vmatpush1.msra.mxu0 0.0
    %937 = vmatprep.subr.mxu0 0.0
    %938 = vmatpush1.msra.mxu0 0.0
    %939 = vmatprep.subr.mxu0 0.0
    %940 = vmatpush1.msra.mxu0 0.0
    %941 = vmatprep.subr.mxu0 0.0
    %942 = vmatpush1.msra.mxu0 0.0
    %943 = vmatprep.subr.mxu0 0.0
    %944 = vmatpush1.msra.mxu0 0.0
    %945 = vmatprep.subr.mxu0 0.0
    %946 = vmatpush1.msra.mxu0 0.0
    %947 = vmatprep.subr.mxu0 0.0
    %948 = vmatpush1.msra.mxu0 0.0
    %949 = vmatprep.subr.mxu0 0.0
    %950 = vmatpush1.msra.mxu0 0.0
    %951 = vmatprep.subr.mxu0 0.0
    %952 = vmatpush1.msra.mxu0 0.0
    %953 = vmatprep.subr.mxu0 0.0
    %954 = vmatpush1.msra.mxu0 0.0
    %955 = vmatprep.subr.mxu0 0.0
    %956 = vmatpush1.msra.mxu0 0.0
    %957 = vmatprep.subr.mxu0 0.0
    %958 = vmatpush1.msra.mxu0 %v921
    %959 = vmatprep.subr.mxu0 0.0
    %960 = vmatpush1.msra.mxu0 %v920
    %961 = vmatprep.subr.mxu0 0.0
    %962 = vmatpush1.msra.mxu0 %v919
    %963 = vmatprep.subr.mxu0 0.0
    %964 = vmatpush1.msra.mxu0 %v918
    %965 = vmatprep.subr.mxu0 0.0
    %966 = vmatpush2.msra.mxu0 0.0
    %967 = vmatprep.subr.mxu0 0.0
    %968 = vmatpush2.msra.mxu0 0.0
    %969 = vmatprep.subr.mxu0 0.0
    %970 = vmatpush2.msra.mxu0 0.0
    %971 = vmatprep.subr.mxu0 0.0
    %972 = vmatpush2.msra.mxu0 0.0
    %973 = vmatprep.subr.mxu0 0.0
    %974 = vmatpush2.msra.mxu0 0.0
    %975 = vmatprep.subr.mxu0 0.0
    %976 = vmatpush2.msra.mxu0 0.0
    %977 = vmatprep.subr.mxu0 0.0
    %978 = vmatpush2.msra.mxu0 0.0
    %979 = vmatprep.subr.mxu0 0.0
    %980 = vmatpush2.msra.mxu0 0.0
    %981 = vmatprep.subr.mxu0 0.0
    %982 = vmatpush2.msra.mxu0 0.0
    %983 = vmatprep.subr.mxu0 0.0
    %984 = vmatpush2.msra.mxu0 0.0
    %985 = vmatprep.subr.mxu0 0.0
    %986 = vmatpush2.msra.mxu0 0.0
    %987 = vmatprep.subr.mxu0 0.0
    %988 = vmatpush2.msra.mxu0 0.0
    %989 = vmatprep.subr.mxu0 0.0
    %990 = vmatpush2.msra.mxu0 0.0
    %991 = vmatprep.subr.mxu0 0.0
    %992 = vmatpush2.msra.mxu0 0.0
    %993 = vmatprep.subr.mxu0 0.0
    %994 = vmatpush2.msra.mxu0 0.0
    %995 = vmatprep.subr.mxu0 0.0
    %996 = vmatpush2.msra.mxu0 0.0
    %997 = vmatprep.mubr.f32.mxu0 0.0
    %998 = vmatmul.mubr.f32.gmra.mxu0 %v931
    %v999 = vpop.f32.mrf.mxu0
    %v1000 = vadd.f32 %v928, %v999
    %v1001 = vpop.f32.mrf.mxu0
    %1002 = vdwg.mxu0
    %v1003 = vmax.f32 %v1000, 0.0
    %1004 = vrot.lane.b32.xlu0 %v517, 32
    %v1005 = vpop.permute.xlu0 %1004
    %1007 = vrot.lane.b32.xlu0 %v679, 48
    %v1008 = vpop.permute.xlu0 %1007
    %1010 = vrot.lane.b32.xlu0 %v841, 64
    %v1011 = vpop.permute.xlu0 %1010
    %1014 = vrot.lane.b32.xlu0 %v1003, 80
    %v1015 = vpop.permute.xlu0 %1014
    %v1017 = vsel %vm268, %v193, %v428
    %v1018 = vsel %vm281, %v1017, %v1005
    %vm1019 = vcmask 392192
    %v1020 = vsel %vm1019, %v1018, %v1008
    %vm1021 = vcmask 523264
    %v1022 = vsel %vm1021, %v1020, %v1011
    %vm1023 = vcmask 654336
    %v1024 = vsel %vm1023, %v1022, %v1015
    %v1025 = vld [vmem:[%s6] sm:$0xff]
    %v1026 = vld [vmem:[%s6 + $0x8] sm:$0xff]
    %v1027 = vld [vmem:[%s6 + $0x10] sm:$0xff]
    %v1028 = vld [vmem:[%s6 + $0x18] sm:$0xff]
    %v1029 = vld [vmem:[%s6 + $0x20] sm:$0xff]
    %v1030 = vld [vmem:[%s6 + $0x28] sm:$0xff]
    %v1031 = vld [vmem:[%s6 + $0x30] sm:$0xff]
    %v1032 = vld [vmem:[%s6 + $0x38] sm:$0xff]
    %v1033 = vld [vmem:[%s6 + $0x40] sm:$0xff]
    %v1034 = vld [vmem:[%s6 + $0x48] sm:$0xff]
    %v1035 = vld [vmem:[%s6 + $0x50] sm:$0xff]
    %v1036 = vld [vmem:[%s6 + $0x58] sm:$0xff]
    %v1037 = vld [vmem:[%s7] sm:$0x1]
    %v1039 = vlaneseq
    %v1040 = vshrl.u32 %v1039, 7
    %v1041 = vsub.s32 0, %v1040
    %v1042 = vrot.slane %v1037, %v1041
    %vm1044 = vcmask 785408
    %v1046 = vsel %vm1044, %v1024, 0
    %1048 = vmatprep.subr.mxu0 0.0
    %1049 = vmatpush1.msra.mxu0 0.0
    %1050 = vmatprep.subr.mxu0 0.0
    %1051 = vmatpush1.msra.mxu0 0.0
    %1052 = vmatprep.subr.mxu0 0.0
    %1053 = vmatpush1.msra.mxu0 0.0
    %1054 = vmatprep.subr.mxu0 0.0
    %1055 = vmatpush1.msra.mxu0 0.0
    %1056 = vmatprep.subr.mxu0 0.0
    %1057 = vmatpush1.msra.mxu0 %v1036
    %1058 = vmatprep.subr.mxu0 0.0
    %1059 = vmatpush1.msra.mxu0 %v1035
    %1060 = vmatprep.subr.mxu0 0.0
    %1061 = vmatpush1.msra.mxu0 %v1034
    %1062 = vmatprep.subr.mxu0 0.0
    %1063 = vmatpush1.msra.mxu0 %v1033
    %1064 = vmatprep.subr.mxu0 0.0
    %1065 = vmatpush1.msra.mxu0 %v1032
    %1066 = vmatprep.subr.mxu0 0.0
    %1067 = vmatpush1.msra.mxu0 %v1031
    %1068 = vmatprep.subr.mxu0 0.0
    %1069 = vmatpush1.msra.mxu0 %v1030
    %1070 = vmatprep.subr.mxu0 0.0
    %1071 = vmatpush1.msra.mxu0 %v1029
    %1072 = vmatprep.subr.mxu0 0.0
    %1073 = vmatpush1.msra.mxu0 %v1028
    %1074 = vmatprep.subr.mxu0 0.0
    %1075 = vmatpush1.msra.mxu0 %v1027
    %1076 = vmatprep.subr.mxu0 0.0
    %1077 = vmatpush1.msra.mxu0 %v1026
    %1078 = vmatprep.subr.mxu0 0.0
    %1079 = vmatpush1.msra.mxu0 %v1025
    %1080 = vmatprep.subr.mxu0 0.0
    %1081 = vmatpush2.msra.mxu0 0.0
    %1082 = vmatprep.subr.mxu0 0.0
    %1083 = vmatpush2.msra.mxu0 0.0
    %1084 = vmatprep.subr.mxu0 0.0
    %1085 = vmatpush2.msra.mxu0 0.0
    %1086 = vmatprep.subr.mxu0 0.0
    %1087 = vmatpush2.msra.mxu0 0.0
    %1088 = vmatprep.subr.mxu0 0.0
    %1089 = vmatpush2.msra.mxu0 0.0
    %1090 = vmatprep.subr.mxu0 0.0
    %1091 = vmatpush2.msra.mxu0 0.0
    %1092 = vmatprep.subr.mxu0 0.0
    %1093 = vmatpush2.msra.mxu0 0.0
    %1094 = vmatprep.subr.mxu0 0.0
    %1095 = vmatpush2.msra.mxu0 0.0
    %1096 = vmatprep.subr.mxu0 0.0
    %1097 = vmatpush2.msra.mxu0 0.0
    %1098 = vmatprep.subr.mxu0 0.0
    %1099 = vmatpush2.msra.mxu0 0.0
    %1100 = vmatprep.subr.mxu0 0.0
    %1101 = vmatpush2.msra.mxu0 0.0
    %1102 = vmatprep.subr.mxu0 0.0
    %1103 = vmatpush2.msra.mxu0 0.0
    %1104 = vmatprep.subr.mxu0 0.0
    %1105 = vmatpush2.msra.mxu0 0.0
    %1106 = vmatprep.subr.mxu0 0.0
    %1107 = vmatpush2.msra.mxu0 0.0
    %1108 = vmatprep.subr.mxu0 0.0
    %1109 = vmatpush2.msra.mxu0 0.0
    %1110 = vmatprep.subr.mxu0 0.0
    %1111 = vmatpush2.msra.mxu0 0.0
    %1112 = vmatprep.mubr.f32.mxu0 0.0
    %1113 = vmatmul.mubr.f32.gmra.mxu0 %v1046
    %v1114 = vpop.f32.mrf.mxu0
    %v1115 = vadd.f32 %v1042, %v1114
    %v1116 = vpop.f32.mrf.mxu0
    %1117 = vdwg.mxu0
    %vm1118 = vcmask 56320
    %1119 = vst.msk [vmem:[#allocation2] sm:$0xff] %vm1118, %v1115
    // Predicated region
    $region34: #{tpu_custom_call.1} parent=1 // pred_check
      _
    $region35: #{tpu_custom_call.1} parent=1 // pred_check_branch
      %1121 = sbr.rel (0) target = $region37
    $region36: #{tpu_custom_call.1} parent=1 // pred_region
      %s1123 = ssub.s32 128, 128
      %1124 = vsyncadd [#allocation3], %s1123
      %s1126 = sshll.u32 [#allocation2], 4
      %s1127 = int_to_ptr.vmem [resolvable:$true] %s1126
      %1129 = dma.vmem_to_hbm [thread:$0]  %s1127, 128, %s8, [#allocation3]
    $region37: #{tpu_custom_call.1} parent=1 // pred_fallthru
      _
    // Predicated region
    $region38: #{tpu_custom_call.1} parent=1 // pred_check
      _
    $region39: #{tpu_custom_call.1} parent=1 // pred_check_branch
      %1131 = sbr.rel (0) target = $region41
    $region40: #{tpu_custom_call.1} parent=1 // pred_region
      %1132 = dma.done [#allocation3], 128
    $region41: #{tpu_custom_call.1} parent=1 // pred_fallthru
      _
    %1133 = vsyncpa [#allocation3], 1

</llo_original>
